<compile_context>
chip_gen: v7x
topology: tpu7x:2x2x1
jax: 0.10.0
libtpu: 0.0.40
codegen_flags: <defaults>
</compile_context>

<pallas_src>
import functools

import jax
import jax.numpy as jnp
from jax import lax
from jax.experimental import pallas as pl
from jax.experimental.pallas import tpu as pltpu


# ---------------------------------------------------------------------------
# Helpers
# ---------------------------------------------------------------------------
def _pair_index_matrix(c):
    """(C, C) int map from (i, j) -> index of the unique unordered pair."""
    idx = [[0] * c for _ in range(c)]
    p = 0
    for i in range(c):
        for j in range(i, c):
            idx[i][j] = p
            idx[j][i] = p
            p += 1
    return jnp.asarray(idx, dtype=jnp.int32)


def _chunk_rows_for_dtype(dtype):
    """Sublane chunk height: 8 rows for 32-bit, 16 for 16-bit (packing-friendly)."""
    return 8 if jnp.dtype(dtype).itemsize >= 4 else 16


def _pick_tile_rows(nr, ch, max_rows):
    """Largest multiple of `ch` that divides nr and is <= max_rows."""
    best = ch
    d = ch
    limit = min(nr, max_rows)
    while d <= limit:
        if nr % d == 0:
            best = d
        d += ch
    return best


def _gram_ref(x):
    """Pure-XLA gram matrix: (B, C, ...) -> (B, C, C), divided by C*N."""
    B, C = x.shape[:2]
    f = x.reshape(B, C, -1).astype(jnp.float32)
    N = f.shape[-1]
    return jnp.einsum('bcn,bdn->bcd', f, f) / (C * N)


def _smooth_l1_mean(pred, target):
    """torch.nn.functional.smooth_l1_loss with beta=1.0, reduction='mean'."""
    d = pred.astype(jnp.float32) - target.astype(jnp.float32)
    ad = jnp.abs(d)
    return jnp.mean(jnp.where(ad < 1.0, 0.5 * d * d, ad - 0.5))


# ---------------------------------------------------------------------------
# Pallas kernel: fused per-level, per-batch channel-pair sums (un-normalized
# gram).  grid = (B, K_total); each level l owns the k-range
# [start_l, start_l + ntiles_l).  Per level: input block (1, C, TR_l, 128),
# resident output block (1, NPAIR, 8, 128) accumulating sum_n f[i,n]*f[j,n].
# ---------------------------------------------------------------------------
def _accumulate_level(feat_ref, out_ref, *, c, tile_rows, chunk_rows):
    npair = c * (c + 1) // 2
    nchunks = tile_rows // chunk_rows

    def body(ck, accs):
        r0 = pl.multiple_of(ck * chunk_rows, chunk_rows)
        chans = []
        for i in range(c):                       # each channel chunk loaded ONCE
            x = feat_ref[0, i, pl.ds(r0, chunk_rows), :]
            if x.dtype != jnp.float32:           # cast only when genuinely needed
                x = x.astype(jnp.float32)
            chans.append(x)
        new = []
        p = 0
        for i in range(c):
            for j in range(i, c):
                new.append(accs[p] + chans[i] * chans[j])   # VPU mul+add
                p += 1
        return tuple(new)

    init = tuple(jnp.zeros((chunk_rows, 128), jnp.float32) for _ in range(npair))
    accs = lax.fori_loop(0, nchunks, body, init, unroll=min(8, nchunks))

    for p in range(npair):
        a = accs[p]
        if chunk_rows != 8:
            a = a.reshape(chunk_rows // 8, 8, 128).sum(axis=0)
        out_ref[0, p] = out_ref[0, p] + a


def _fused_gram_kernel(*refs, c, metas):
    n_levels = len(metas)
    feat_refs = refs[:n_levels]
    out_refs = refs[n_levels:]
    k = pl.program_id(1)

    @pl.when(k == 0)
    def _():
        for o in out_refs:
            o[...] = jnp.zeros_like(o)

    for feat_ref, out_ref, (start, ntiles, tr, ch) in zip(feat_refs, out_refs, metas):
        @pl.when(jnp.logical_and(k >= start, k < start + ntiles))
        def _(feat_ref=feat_ref, out_ref=out_ref, tr=tr, ch=ch):
            _accumulate_level(feat_ref, out_ref, c=c, tile_rows=tr, chunk_rows=ch)


def _fused_grams_pallas(feats, max_tile_rows=1024,
                        vmem_budget_bytes=24 * 1024 * 1024):
    """feats: list of (B, C, N_l), each N_l % (128*CH_l) == 0 -> list of (B, C, C)."""
    B, C = feats[0].shape[:2]
    NPAIR = C * (C + 1) // 2
    L = len(feats)

    # Keep the sum of double-buffered input blocks under the VMEM budget.
    per_row_bytes = sum(2 * C * 128 * jnp.dtype(f.dtype).itemsize for f in feats)
    budget_rows = max(16, vmem_budget_bytes // max(per_row_bytes, 1))

    xs, metas = [], []
    start = 0
    for f in feats:
        N = f.shape[-1]
        NR = N // 128
        ch = _chunk_rows_for_dtype(f.dtype)
        tr = _pick_tile_rows(NR, ch, min(max_tile_rows, budget_rows))
        ntiles = NR // tr
        xs.append(f.reshape(B, C, NR, 128))          # lane-dense repack (no copy)
        metas.append((start, ntiles, tr, ch))
        start += ntiles
    K = start

    in_specs = []
    for x, (st, nt, tr, ch) in zip(xs, metas):
        def imap(b, k, st=st, nt=nt):
            # Clamp to this level's own tiles: outside its k-range the block
            # index is constant, so the pipeline does not re-DMA it.
            kk = jnp.minimum(jnp.maximum(k - st, 0), nt - 1)
            return (b, 0, kk, 0)
        in_specs.append(pl.BlockSpec((1, C, tr, 128), imap))

    out_specs = [pl.BlockSpec((1, NPAIR, 8, 128), lambda b, k: (b, 0, 0, 0))
                 for _ in feats]
    out_shapes = [jax.ShapeDtypeStruct((B, NPAIR, 8, 128), jnp.float32)
                  for _ in feats]

    flops = sum(2 * B * NPAIR * f.shape[-1] for f in feats)
    bytes_in = sum(B * C * f.shape[-1] * jnp.dtype(f.dtype).itemsize for f in feats)
    bytes_out = L * B * NPAIR * 8 * 128 * 4

    kernel = functools.partial(_fused_gram_kernel, c=C, metas=tuple(metas))
    outs = pl.pallas_call(
        kernel,
        out_shape=out_shapes,
        grid_spec=pltpu.PrefetchScalarGridSpec(
            num_scalar_prefetch=0,
            grid=(B, K),
            in_specs=in_specs,
            out_specs=out_specs,
        ),
        compiler_params=pltpu.CompilerParams(
            # TODO(synk): for v7x with B == 1, split the K axis across the two
            # TensorCores (leading core axis + per-core partial slabs summed in
            # the XLA epilogue) instead of relying on batch parallelism.
            dimension_semantics=("parallel", "arbitrary"),
            vmem_limit_bytes=32 * 1024 * 1024,
        ),
        cost_estimate=pl.CostEstimate(
            flops=flops, transcendentals=0,
            bytes_accessed=bytes_in + bytes_out),
    )(*xs)

    idx = _pair_index_matrix(C)
    grams = []
    for out, f in zip(outs, feats):
        N = f.shape[-1]
        pair_sums = out.sum(axis=(-2, -1))               # (B, NPAIR) -- tiny, XLA
        grams.append(pair_sums[:, idx] * (1.0 / (C * N)))
    return grams


def gram_matrices(xs, max_tile_rows=1024):
    """List of (B, C, H, W) -> list of (B, C, C) grams (each divided by C*N)."""
    results = [None] * len(xs)
    groups = {}   # (B, C) -> (original indices, flattened feats)
    for i, x in enumerate(xs):
        B, C = x.shape[:2]
        f = x.reshape(B, C, -1)
        N = f.shape[-1]
        ch = _chunk_rows_for_dtype(x.dtype)
        if N >= 1024 and N % (128 * ch) == 0:
            groups.setdefault((B, C), ([], []))
            groups[(B, C)][0].append(i)
            groups[(B, C)][1].append(f)
        else:
            # Tiny / non-lane-aligned levels (8x8, 16x16 ToRGB): plain XLA is
            # cheaper than any kernel overhead.
            results[i] = _gram_ref(x)
    for _, (idxs, feats) in groups.items():
        grams = _fused_grams_pallas(feats, max_tile_rows=max_tile_rows)
        for i, g in zip(idxs, grams):
            results[i] = g
    return results


def gram_matrix(x, max_tile_rows=1024):
    """(B, C, H, W) -> (B, C, C), divided by C*N (matches torch gram_matrix)."""
    return gram_matrices([x], max_tile_rows=max_tile_rows)[0]


# ---------------------------------------------------------------------------
# Module port
# ---------------------------------------------------------------------------
class ColorTransferLoss:
    """Pallas port of losses/color_transfer_loss.py::ColorTransferLoss."""

    def __init__(self, init_rgbs, scale_rgb=False):
        # TODO(synk): scale_rgb=True path not ported (PyTorch broadcasts a (B,)
        # std against (B, C, H, W), which only works when W == B); default is False.
        assert not scale_rgb, "scale_rgb=True not supported in this port"
        self.stds = [1 for _ in init_rgbs]
        # Target grams run once at init -> plain XLA.
        self.grams = [_gram_ref(rgb) for rgb in init_rgbs]

    def __call__(self, rgbs, level=None):
        if level is None:
            level = len(self.grams)
        grams = gram_matrices(list(rgbs[:level]))   # one fused pallas_call
        loss = jnp.float32(0.0)
        for G, tgt in zip(grams, self.grams[:level]):
            loss = loss + _smooth_l1_mean(G, tgt)
        return loss


# ---------------------------------------------------------------------------
# Pure-JAX reference (for a correctness check)
# ---------------------------------------------------------------------------
def _ref_loss(init_rgbs, rgbs, level=None):
    if level is None:
        level = len(init_rgbs)
    loss = jnp.float32(0.0)
    for rgb, init in zip(rgbs[:level], init_rgbs[:level]):
        loss = loss + _smooth_l1_mean(_gram_ref(rgb), _gram_ref(init))
    return loss


if __name__ == "__main__":
    key = jax.random.PRNGKey(0)
    B, C = 2, 3                 # StyleGAN2 ToRGB outputs are RGB
    sizes = [8, 32, 64]         # 8x8 -> XLA fallback; 32x32 + 64x64 -> one fused Pallas call

    keys = jax.random.split(key, 2 * len(sizes))
    init_rgbs = [jax.random.normal(keys[2 * i], (B, C, s, s), jnp.float32)
                 for i, s in enumerate(sizes)]
    rgbs = [jax.random.normal(keys[2 * i + 1], (B, C, s, s), jnp.float32) * 2.0
            for i, s in enumerate(sizes)]

    loss_mod = ColorTransferLoss(init_rgbs, scale_rgb=False)
    loss = jax.block_until_ready(loss_mod(rgbs))
    ref = jax.block_until_ready(_ref_loss(init_rgbs, rgbs))
    assert jnp.allclose(loss, ref, rtol=1e-4, atol=1e-5), (loss, ref)

    # `level` argument.
    loss2 = jax.block_until_ready(loss_mod(rgbs, level=2))
    ref2 = jax.block_until_ready(_ref_loss(init_rgbs, rgbs, level=2))
    assert jnp.allclose(loss2, ref2, rtol=1e-4, atol=1e-5), (loss2, ref2)

    # Multi-tile accumulation + multi-level routing inside one fused call
    # (forced small tiles so several k-steps per level are exercised).
    g_tiled = gram_matrices([rgbs[1], rgbs[2]], max_tile_rows=8)
    for g, x in zip(g_tiled, [rgbs[1], rgbs[2]]):
        g = jax.block_until_ready(g)
        g_ref = jax.block_until_ready(_gram_ref(x))
        assert jnp.allclose(g, g_ref, rtol=1e-4, atol=1e-5), (g, g_ref)

    # bf16 inputs stay bf16 through HBM (cast to f32 in-register in the kernel).
    x_bf16 = rgbs[2].astype(jnp.bfloat16)
    g_bf = jax.block_until_ready(gram_matrix(x_bf16))
    g_bf_ref = jax.block_until_ready(_gram_ref(x_bf16))
    assert jnp.allclose(g_bf, g_bf_ref, rtol=1e-3, atol=1e-3), (g_bf, g_bf_ref)

    print("KERNEL_OK")
</pallas_src>

<mosaic_0001>
module attributes {stable_mosaic.version = 11 : i64} {
  func.func @_fused_gram_kernel(%arg0: i32, %arg1: i32, %arg2: memref<1x3x8x128xf32, #tpu.memory_space<vmem>>, %arg3: memref<1x3x32x128xf32, #tpu.memory_space<vmem>>, %arg4: memref<1x6x8x128xf32, #tpu.memory_space<vmem>>, %arg5: memref<1x6x8x128xf32, #tpu.memory_space<vmem>>) attributes {dimension_semantics = [#tpu.dimension_semantics<parallel>, #tpu.dimension_semantics<arbitrary>], iteration_bounds = array<i64: 2, 2>, scalar_prefetch = 0 : i64, scratch_operands = 0 : i64, tpu.core_type = #tpu.core_type<tc>, window_params = [{transform_indices = @transform_0, window_bounds = array<i64: 1, 3, 8, 128>}, {transform_indices = @transform_1, window_bounds = array<i64: 1, 3, 32, 128>}, {transform_indices = @transform_2, window_bounds = array<i64: 1, 6, 8, 128>}, {transform_indices = @transform_3, window_bounds = array<i64: 1, 6, 8, 128>}]} {
    %c0_i32 = arith.constant 0 : i32
    %0 = arith.cmpi eq, %arg1, %c0_i32 : i32
    %1 = arith.extui %0 : i1 to i32
    %c0_i32_0 = arith.constant 0 : i32
    %2 = arith.cmpi ne, %1, %c0_i32_0 : i32
    scf.if %2 {
      %cst = arith.constant 0.000000e+00 : f32
      %13 = vector.broadcast %cst : f32 to vector<1x6x8x128xf32>
      %c0 = arith.constant 0 : index
      %c0_5 = arith.constant 0 : index
      %c0_6 = arith.constant 0 : index
      %c0_7 = arith.constant 0 : index
      %14 = vector.load %arg4[%c0, %c0_5, %c0_6, %c0_7] : memref<1x6x8x128xf32, #tpu.memory_space<vmem>>, vector<1x6x8x128xf32>
      tpu.vector_store %arg4[%c0, %c0_5, %c0_6, %c0_7], %13 {strides = array<i32>} : memref<1x6x8x128xf32, #tpu.memory_space<vmem>>, vector<1x6x8x128xf32>,
      %cst_8 = arith.constant 0.000000e+00 : f32
      %15 = vector.broadcast %cst_8 : f32 to vector<1x6x8x128xf32>
      %c0_9 = arith.constant 0 : index
      %c0_10 = arith.constant 0 : index
      %c0_11 = arith.constant 0 : index
      %c0_12 = arith.constant 0 : index
      %16 = vector.load %arg5[%c0_9, %c0_10, %c0_11, %c0_12] : memref<1x6x8x128xf32, #tpu.memory_space<vmem>>, vector<1x6x8x128xf32>
      tpu.vector_store %arg5[%c0_9, %c0_10, %c0_11, %c0_12], %15 {strides = array<i32>} : memref<1x6x8x128xf32, #tpu.memory_space<vmem>>, vector<1x6x8x128xf32>,
    } else {
    }
    %c0_i32_1 = arith.constant 0 : i32
    %3 = arith.cmpi sge, %arg1, %c0_i32_1 : i32
    %c1_i32 = arith.constant 1 : i32
    %4 = arith.cmpi slt, %arg1, %c1_i32 : i32
    %5 = arith.andi %3, %4 : i1
    %6 = arith.extui %5 : i1 to i32
    %c0_i32_2 = arith.constant 0 : i32
    %7 = arith.cmpi ne, %6, %c0_i32_2 : i32
    scf.if %7 {
      %cst = arith.constant 0.000000e+00 : f32
      %13 = vector.broadcast %cst : f32 to vector<8x128xf32>
      %cst_5 = arith.constant 0.000000e+00 : f32
      %14 = vector.broadcast %cst_5 : f32 to vector<8x128xf32>
      %cst_6 = arith.constant 0.000000e+00 : f32
      %15 = vector.broadcast %cst_6 : f32 to vector<8x128xf32>
      %cst_7 = arith.constant 0.000000e+00 : f32
      %16 = vector.broadcast %cst_7 : f32 to vector<8x128xf32>
      %cst_8 = arith.constant 0.000000e+00 : f32
      %17 = vector.broadcast %cst_8 : f32 to vector<8x128xf32>
      %cst_9 = arith.constant 0.000000e+00 : f32
      %18 = vector.broadcast %cst_9 : f32 to vector<8x128xf32>
      %c0_i32_10 = arith.constant 0 : i32
      %c8_i32 = arith.constant 8 : i32
      %19 = arith.muli %c0_i32_10, %c8_i32 : i32
      %20 = tpu.assume_multiple %19, 8 : i32
      %c0 = arith.constant 0 : index
      %c0_11 = arith.constant 0 : index
      %21 = arith.index_cast %20 : i32 to index
      %c0_12 = arith.constant 0 : index
      %22 = vector.load %arg2[%c0, %c0_11, %21, %c0_12] : memref<1x3x8x128xf32, #tpu.memory_space<vmem>>, vector<1x1x8x128xf32>
      %23 = vector.shape_cast %22 : vector<1x1x8x128xf32> to vector<8x128xf32>
      %c0_13 = arith.constant 0 : index
      %c1 = arith.constant 1 : index
      %24 = arith.index_cast %20 : i32 to index
      %c0_14 = arith.constant 0 : index
      %25 = vector.load %arg2[%c0_13, %c1, %24, %c0_14] : memref<1x3x8x128xf32, #tpu.memory_space<vmem>>, vector<1x1x8x128xf32>
      %26 = vector.shape_cast %25 : vector<1x1x8x128xf32> to vector<8x128xf32>
      %c0_15 = arith.constant 0 : index
      %c2 = arith.constant 2 : index
      %27 = arith.index_cast %20 : i32 to index
      %c0_16 = arith.constant 0 : index
      %28 = vector.load %arg2[%c0_15, %c2, %27, %c0_16] : memref<1x3x8x128xf32, #tpu.memory_space<vmem>>, vector<1x1x8x128xf32>
      %29 = vector.shape_cast %28 : vector<1x1x8x128xf32> to vector<8x128xf32>
      %30 = arith.mulf %23, %23 : vector<8x128xf32>
      %31 = arith.addf %13, %30 : vector<8x128xf32>
      %32 = arith.mulf %23, %26 : vector<8x128xf32>
      %33 = arith.addf %14, %32 : vector<8x128xf32>
      %34 = arith.mulf %23, %29 : vector<8x128xf32>
      %35 = arith.addf %15, %34 : vector<8x128xf32>
      %36 = arith.mulf %26, %26 : vector<8x128xf32>
      %37 = arith.addf %16, %36 : vector<8x128xf32>
      %38 = arith.mulf %26, %29 : vector<8x128xf32>
      %39 = arith.addf %17, %38 : vector<8x128xf32>
      %40 = arith.mulf %29, %29 : vector<8x128xf32>
      %41 = arith.addf %18, %40 : vector<8x128xf32>
      %c1_i32_17 = arith.constant 1 : i32
      %c0_18 = arith.constant 0 : index
      %c0_19 = arith.constant 0 : index
      %c0_20 = arith.constant 0 : index
      %c0_21 = arith.constant 0 : index
      %42 = vector.load %arg4[%c0_18, %c0_19, %c0_20, %c0_21] : memref<1x6x8x128xf32, #tpu.memory_space<vmem>>, vector<1x1x8x128xf32>
      %43 = vector.shape_cast %42 : vector<1x1x8x128xf32> to vector<8x128xf32>
      %44 = arith.addf %43, %31 : vector<8x128xf32>
      %c0_22 = arith.constant 0 : index
      %c0_23 = arith.constant 0 : index
      %c0_24 = arith.constant 0 : index
      %c0_25 = arith.constant 0 : index
      %45 = vector.load %arg4[%c0_22, %c0_23, %c0_24, %c0_25] : memref<1x6x8x128xf32, #tpu.memory_space<vmem>>, vector<1x1x8x128xf32>
      %46 = vector.shape_cast %45 : vector<1x1x8x128xf32> to vector<8x128xf32>
      %47 = vector.shape_cast %44 : vector<8x128xf32> to vector<1x1x8x128xf32>
      tpu.vector_store %arg4[%c0_22, %c0_23, %c0_24, %c0_25], %47 {strides = array<i32>} : memref<1x6x8x128xf32, #tpu.memory_space<vmem>>, vector<1x1x8x128xf32>,
      %c0_26 = arith.constant 0 : index
      %c1_27 = arith.constant 1 : index
      %c0_28 = arith.constant 0 : index
      %c0_29 = arith.constant 0 : index
      %48 = vector.load %arg4[%c0_26, %c1_27, %c0_28, %c0_29] : memref<1x6x8x128xf32, #tpu.memory_space<vmem>>, vector<1x1x8x128xf32>
      %49 = vector.shape_cast %48 : vector<1x1x8x128xf32> to vector<8x128xf32>
      %50 = arith.addf %49, %33 : vector<8x128xf32>
      %c0_30 = arith.constant 0 : index
      %c1_31 = arith.constant 1 : index
      %c0_32 = arith.constant 0 : index
      %c0_33 = arith.constant 0 : index
      %51 = vector.load %arg4[%c0_30, %c1_31, %c0_32, %c0_33] : memref<1x6x8x128xf32, #tpu.memory_space<vmem>>, vector<1x1x8x128xf32>
      %52 = vector.shape_cast %51 : vector<1x1x8x128xf32> to vector<8x128xf32>
      %53 = vector.shape_cast %50 : vector<8x128xf32> to vector<1x1x8x128xf32>
      tpu.vector_store %arg4[%c0_30, %c1_31, %c0_32, %c0_33], %53 {strides = array<i32>} : memref<1x6x8x128xf32, #tpu.memory_space<vmem>>, vector<1x1x8x128xf32>,
      %c0_34 = arith.constant 0 : index
      %c2_35 = arith.constant 2 : index
      %c0_36 = arith.constant 0 : index
      %c0_37 = arith.constant 0 : index
      %54 = vector.load %arg4[%c0_34, %c2_35, %c0_36, %c0_37] : memref<1x6x8x128xf32, #tpu.memory_space<vmem>>, vector<1x1x8x128xf32>
      %55 = vector.shape_cast %54 : vector<1x1x8x128xf32> to vector<8x128xf32>
      %56 = arith.addf %55, %35 : vector<8x128xf32>
      %c0_38 = arith.constant 0 : index
      %c2_39 = arith.constant 2 : index
      %c0_40 = arith.constant 0 : index
      %c0_41 = arith.constant 0 : index
      %57 = vector.load %arg4[%c0_38, %c2_39, %c0_40, %c0_41] : memref<1x6x8x128xf32, #tpu.memory_space<vmem>>, vector<1x1x8x128xf32>
      %58 = vector.shape_cast %57 : vector<1x1x8x128xf32> to vector<8x128xf32>
      %59 = vector.shape_cast %56 : vector<8x128xf32> to vector<1x1x8x128xf32>
      tpu.vector_store %arg4[%c0_38, %c2_39, %c0_40, %c0_41], %59 {strides = array<i32>} : memref<1x6x8x128xf32, #tpu.memory_space<vmem>>, vector<1x1x8x128xf32>,
      %c0_42 = arith.constant 0 : index
      %c3 = arith.constant 3 : index
      %c0_43 = arith.constant 0 : index
      %c0_44 = arith.constant 0 : index
      %60 = vector.load %arg4[%c0_42, %c3, %c0_43, %c0_44] : memref<1x6x8x128xf32, #tpu.memory_space<vmem>>, vector<1x1x8x128xf32>
      %61 = vector.shape_cast %60 : vector<1x1x8x128xf32> to vector<8x128xf32>
      %62 = arith.addf %61, %37 : vector<8x128xf32>
      %c0_45 = arith.constant 0 : index
      %c3_46 = arith.constant 3 : index
      %c0_47 = arith.constant 0 : index
      %c0_48 = arith.constant 0 : index
      %63 = vector.load %arg4[%c0_45, %c3_46, %c0_47, %c0_48] : memref<1x6x8x128xf32, #tpu.memory_space<vmem>>, vector<1x1x8x128xf32>
      %64 = vector.shape_cast %63 : vector<1x1x8x128xf32> to vector<8x128xf32>
      %65 = vector.shape_cast %62 : vector<8x128xf32> to vector<1x1x8x128xf32>
      tpu.vector_store %arg4[%c0_45, %c3_46, %c0_47, %c0_48], %65 {strides = array<i32>} : memref<1x6x8x128xf32, #tpu.memory_space<vmem>>, vector<1x1x8x128xf32>,
      %c0_49 = arith.constant 0 : index
      %c4 = arith.constant 4 : index
      %c0_50 = arith.constant 0 : index
      %c0_51 = arith.constant 0 : index
      %66 = vector.load %arg4[%c0_49, %c4, %c0_50, %c0_51] : memref<1x6x8x128xf32, #tpu.memory_space<vmem>>, vector<1x1x8x128xf32>
      %67 = vector.shape_cast %66 : vector<1x1x8x128xf32> to vector<8x128xf32>
      %68 = arith.addf %67, %39 : vector<8x128xf32>
      %c0_52 = arith.constant 0 : index
      %c4_53 = arith.constant 4 : index
      %c0_54 = arith.constant 0 : index
      %c0_55 = arith.constant 0 : index
      %69 = vector.load %arg4[%c0_52, %c4_53, %c0_54, %c0_55] : memref<1x6x8x128xf32, #tpu.memory_space<vmem>>, vector<1x1x8x128xf32>
      %70 = vector.shape_cast %69 : vector<1x1x8x128xf32> to vector<8x128xf32>
      %71 = vector.shape_cast %68 : vector<8x128xf32> to vector<1x1x8x128xf32>
      tpu.vector_store %arg4[%c0_52, %c4_53, %c0_54, %c0_55], %71 {strides = array<i32>} : memref<1x6x8x128xf32, #tpu.memory_space<vmem>>, vector<1x1x8x128xf32>,
      %c0_56 = arith.constant 0 : index
      %c5 = arith.constant 5 : index
      %c0_57 = arith.constant 0 : index
      %c0_58 = arith.constant 0 : index
      %72 = vector.load %arg4[%c0_56, %c5, %c0_57, %c0_58] : memref<1x6x8x128xf32, #tpu.memory_space<vmem>>, vector<1x1x8x128xf32>
      %73 = vector.shape_cast %72 : vector<1x1x8x128xf32> to vector<8x128xf32>
      %74 = arith.addf %73, %41 : vector<8x128xf32>
      %c0_59 = arith.constant 0 : index
      %c5_60 = arith.constant 5 : index
      %c0_61 = arith.constant 0 : index
      %c0_62 = arith.constant 0 : index
      %75 = vector.load %arg4[%c0_59, %c5_60, %c0_61, %c0_62] : memref<1x6x8x128xf32, #tpu.memory_space<vmem>>, vector<1x1x8x128xf32>
      %76 = vector.shape_cast %75 : vector<1x1x8x128xf32> to vector<8x128xf32>
      %77 = vector.shape_cast %74 : vector<8x128xf32> to vector<1x1x8x128xf32>
      tpu.vector_store %arg4[%c0_59, %c5_60, %c0_61, %c0_62], %77 {strides = array<i32>} : memref<1x6x8x128xf32, #tpu.memory_space<vmem>>, vector<1x1x8x128xf32>,
    } else {
    }
    %c1_i32_3 = arith.constant 1 : i32
    %8 = arith.cmpi sge, %arg1, %c1_i32_3 : i32
    %c2_i32 = arith.constant 2 : i32
    %9 = arith.cmpi slt, %arg1, %c2_i32 : i32
    %10 = arith.andi %8, %9 : i1
    %11 = arith.extui %10 : i1 to i32
    %c0_i32_4 = arith.constant 0 : i32
    %12 = arith.cmpi ne, %11, %c0_i32_4 : i32
    scf.if %12 {
      %cst = arith.constant 0.000000e+00 : f32
      %13 = vector.broadcast %cst : f32 to vector<8x128xf32>
      %cst_5 = arith.constant 0.000000e+00 : f32
      %14 = vector.broadcast %cst_5 : f32 to vector<8x128xf32>
      %cst_6 = arith.constant 0.000000e+00 : f32
      %15 = vector.broadcast %cst_6 : f32 to vector<8x128xf32>
      %cst_7 = arith.constant 0.000000e+00 : f32
      %16 = vector.broadcast %cst_7 : f32 to vector<8x128xf32>
      %cst_8 = arith.constant 0.000000e+00 : f32
      %17 = vector.broadcast %cst_8 : f32 to vector<8x128xf32>
      %cst_9 = arith.constant 0.000000e+00 : f32
      %18 = vector.broadcast %cst_9 : f32 to vector<8x128xf32>
      %c0_i32_10 = arith.constant 0 : i32
      %c8_i32 = arith.constant 8 : i32
      %19 = arith.muli %c0_i32_10, %c8_i32 : i32
      %20 = tpu.assume_multiple %19, 8 : i32
      %c0 = arith.constant 0 : index
      %c0_11 = arith.constant 0 : index
      %21 = arith.index_cast %20 : i32 to index
      %c0_12 = arith.constant 0 : index
      %22 = vector.load %arg3[%c0, %c0_11, %21, %c0_12] : memref<1x3x32x128xf32, #tpu.memory_space<vmem>>, vector<1x1x8x128xf32>
      %23 = vector.shape_cast %22 : vector<1x1x8x128xf32> to vector<8x128xf32>
      %c0_13 = arith.constant 0 : index
      %c1 = arith.constant 1 : index
      %24 = arith.index_cast %20 : i32 to index
      %c0_14 = arith.constant 0 : index
      %25 = vector.load %arg3[%c0_13, %c1, %24, %c0_14] : memref<1x3x32x128xf32, #tpu.memory_space<vmem>>, vector<1x1x8x128xf32>
      %26 = vector.shape_cast %25 : vector<1x1x8x128xf32> to vector<8x128xf32>
      %c0_15 = arith.constant 0 : index
      %c2 = arith.constant 2 : index
      %27 = arith.index_cast %20 : i32 to index
      %c0_16 = arith.constant 0 : index
      %28 = vector.load %arg3[%c0_15, %c2, %27, %c0_16] : memref<1x3x32x128xf32, #tpu.memory_space<vmem>>, vector<1x1x8x128xf32>
      %29 = vector.shape_cast %28 : vector<1x1x8x128xf32> to vector<8x128xf32>
      %30 = arith.mulf %23, %23 : vector<8x128xf32>
      %31 = arith.addf %13, %30 : vector<8x128xf32>
      %32 = arith.mulf %23, %26 : vector<8x128xf32>
      %33 = arith.addf %14, %32 : vector<8x128xf32>
      %34 = arith.mulf %23, %29 : vector<8x128xf32>
      %35 = arith.addf %15, %34 : vector<8x128xf32>
      %36 = arith.mulf %26, %26 : vector<8x128xf32>
      %37 = arith.addf %16, %36 : vector<8x128xf32>
      %38 = arith.mulf %26, %29 : vector<8x128xf32>
      %39 = arith.addf %17, %38 : vector<8x128xf32>
      %40 = arith.mulf %29, %29 : vector<8x128xf32>
      %41 = arith.addf %18, %40 : vector<8x128xf32>
      %c1_i32_17 = arith.constant 1 : i32
      %c8_i32_18 = arith.constant 8 : i32
      %42 = arith.muli %c1_i32_17, %c8_i32_18 : i32
      %43 = tpu.assume_multiple %42, 8 : i32
      %c0_19 = arith.constant 0 : index
      %c0_20 = arith.constant 0 : index
      %44 = arith.index_cast %43 : i32 to index
      %c0_21 = arith.constant 0 : index
      %45 = vector.load %arg3[%c0_19, %c0_20, %44, %c0_21] : memref<1x3x32x128xf32, #tpu.memory_space<vmem>>, vector<1x1x8x128xf32>
      %46 = vector.shape_cast %45 : vector<1x1x8x128xf32> to vector<8x128xf32>
      %c0_22 = arith.constant 0 : index
      %c1_23 = arith.constant 1 : index
      %47 = arith.index_cast %43 : i32 to index
      %c0_24 = arith.constant 0 : index
      %48 = vector.load %arg3[%c0_22, %c1_23, %47, %c0_24] : memref<1x3x32x128xf32, #tpu.memory_space<vmem>>, vector<1x1x8x128xf32>
      %49 = vector.shape_cast %48 : vector<1x1x8x128xf32> to vector<8x128xf32>
      %c0_25 = arith.constant 0 : index
      %c2_26 = arith.constant 2 : index
      %50 = arith.index_cast %43 : i32 to index
      %c0_27 = arith.constant 0 : index
      %51 = vector.load %arg3[%c0_25, %c2_26, %50, %c0_27] : memref<1x3x32x128xf32, #tpu.memory_space<vmem>>, vector<1x1x8x128xf32>
      %52 = vector.shape_cast %51 : vector<1x1x8x128xf32> to vector<8x128xf32>
      %53 = arith.mulf %46, %46 : vector<8x128xf32>
      %54 = arith.addf %31, %53 : vector<8x128xf32>
      %55 = arith.mulf %46, %49 : vector<8x128xf32>
      %56 = arith.addf %33, %55 : vector<8x128xf32>
      %57 = arith.mulf %46, %52 : vector<8x128xf32>
      %58 = arith.addf %35, %57 : vector<8x128xf32>
      %59 = arith.mulf %49, %49 : vector<8x128xf32>
      %60 = arith.addf %37, %59 : vector<8x128xf32>
      %61 = arith.mulf %49, %52 : vector<8x128xf32>
      %62 = arith.addf %39, %61 : vector<8x128xf32>
      %63 = arith.mulf %52, %52 : vector<8x128xf32>
      %64 = arith.addf %41, %63 : vector<8x128xf32>
      %c2_i32_28 = arith.constant 2 : i32
      %c8_i32_29 = arith.constant 8 : i32
      %65 = arith.muli %c2_i32_28, %c8_i32_29 : i32
      %66 = tpu.assume_multiple %65, 8 : i32
      %c0_30 = arith.constant 0 : index
      %c0_31 = arith.constant 0 : index
      %67 = arith.index_cast %66 : i32 to index
      %c0_32 = arith.constant 0 : index
      %68 = vector.load %arg3[%c0_30, %c0_31, %67, %c0_32] : memref<1x3x32x128xf32, #tpu.memory_space<vmem>>, vector<1x1x8x128xf32>
      %69 = vector.shape_cast %68 : vector<1x1x8x128xf32> to vector<8x128xf32>
      %c0_33 = arith.constant 0 : index
      %c1_34 = arith.constant 1 : index
      %70 = arith.index_cast %66 : i32 to index
      %c0_35 = arith.constant 0 : index
      %71 = vector.load %arg3[%c0_33, %c1_34, %70, %c0_35] : memref<1x3x32x128xf32, #tpu.memory_space<vmem>>, vector<1x1x8x128xf32>
      %72 = vector.shape_cast %71 : vector<1x1x8x128xf32> to vector<8x128xf32>
      %c0_36 = arith.constant 0 : index
      %c2_37 = arith.constant 2 : index
      %73 = arith.index_cast %66 : i32 to index
      %c0_38 = arith.constant 0 : index
      %74 = vector.load %arg3[%c0_36, %c2_37, %73, %c0_38] : memref<1x3x32x128xf32, #tpu.memory_space<vmem>>, vector<1x1x8x128xf32>
      %75 = vector.shape_cast %74 : vector<1x1x8x128xf32> to vector<8x128xf32>
      %76 = arith.mulf %69, %69 : vector<8x128xf32>
      %77 = arith.addf %54, %76 : vector<8x128xf32>
      %78 = arith.mulf %69, %72 : vector<8x128xf32>
      %79 = arith.addf %56, %78 : vector<8x128xf32>
      %80 = arith.mulf %69, %75 : vector<8x128xf32>
      %81 = arith.addf %58, %80 : vector<8x128xf32>
      %82 = arith.mulf %72, %72 : vector<8x128xf32>
      %83 = arith.addf %60, %82 : vector<8x128xf32>
      %84 = arith.mulf %72, %75 : vector<8x128xf32>
      %85 = arith.addf %62, %84 : vector<8x128xf32>
      %86 = arith.mulf %75, %75 : vector<8x128xf32>
      %87 = arith.addf %64, %86 : vector<8x128xf32>
      %c3_i32 = arith.constant 3 : i32
      %c8_i32_39 = arith.constant 8 : i32
      %88 = arith.muli %c3_i32, %c8_i32_39 : i32
      %89 = tpu.assume_multiple %88, 8 : i32
      %c0_40 = arith.constant 0 : index
      %c0_41 = arith.constant 0 : index
      %90 = arith.index_cast %89 : i32 to index
      %c0_42 = arith.constant 0 : index
      %91 = vector.load %arg3[%c0_40, %c0_41, %90, %c0_42] : memref<1x3x32x128xf32, #tpu.memory_space<vmem>>, vector<1x1x8x128xf32>
      %92 = vector.shape_cast %91 : vector<1x1x8x128xf32> to vector<8x128xf32>
      %c0_43 = arith.constant 0 : index
      %c1_44 = arith.constant 1 : index
      %93 = arith.index_cast %89 : i32 to index
      %c0_45 = arith.constant 0 : index
      %94 = vector.load %arg3[%c0_43, %c1_44, %93, %c0_45] : memref<1x3x32x128xf32, #tpu.memory_space<vmem>>, vector<1x1x8x128xf32>
      %95 = vector.shape_cast %94 : vector<1x1x8x128xf32> to vector<8x128xf32>
      %c0_46 = arith.constant 0 : index
      %c2_47 = arith.constant 2 : index
      %96 = arith.index_cast %89 : i32 to index
      %c0_48 = arith.constant 0 : index
      %97 = vector.load %arg3[%c0_46, %c2_47, %96, %c0_48] : memref<1x3x32x128xf32, #tpu.memory_space<vmem>>, vector<1x1x8x128xf32>
      %98 = vector.shape_cast %97 : vector<1x1x8x128xf32> to vector<8x128xf32>
      %99 = arith.mulf %92, %92 : vector<8x128xf32>
      %100 = arith.addf %77, %99 : vector<8x128xf32>
      %101 = arith.mulf %92, %95 : vector<8x128xf32>
      %102 = arith.addf %79, %101 : vector<8x128xf32>
      %103 = arith.mulf %92, %98 : vector<8x128xf32>
      %104 = arith.addf %81, %103 : vector<8x128xf32>
      %105 = arith.mulf %95, %95 : vector<8x128xf32>
      %106 = arith.addf %83, %105 : vector<8x128xf32>
      %107 = arith.mulf %95, %98 : vector<8x128xf32>
      %108 = arith.addf %85, %107 : vector<8x128xf32>
      %109 = arith.mulf %98, %98 : vector<8x128xf32>
      %110 = arith.addf %87, %109 : vector<8x128xf32>
      %c4_i32 = arith.constant 4 : i32
      %c0_49 = arith.constant 0 : index
      %c0_50 = arith.constant 0 : index
      %c0_51 = arith.constant 0 : index
      %c0_52 = arith.constant 0 : index
      %111 = vector.load %arg5[%c0_49, %c0_50, %c0_51, %c0_52] : memref<1x6x8x128xf32, #tpu.memory_space<vmem>>, vector<1x1x8x128xf32>
      %112 = vector.shape_cast %111 : vector<1x1x8x128xf32> to vector<8x128xf32>
      %113 = arith.addf %112, %100 : vector<8x128xf32>
      %c0_53 = arith.constant 0 : index
      %c0_54 = arith.constant 0 : index
      %c0_55 = arith.constant 0 : index
      %c0_56 = arith.constant 0 : index
      %114 = vector.load %arg5[%c0_53, %c0_54, %c0_55, %c0_56] : memref<1x6x8x128xf32, #tpu.memory_space<vmem>>, vector<1x1x8x128xf32>
      %115 = vector.shape_cast %114 : vector<1x1x8x128xf32> to vector<8x128xf32>
      %116 = vector.shape_cast %113 : vector<8x128xf32> to vector<1x1x8x128xf32>
      tpu.vector_store %arg5[%c0_53, %c0_54, %c0_55, %c0_56], %116 {strides = array<i32>} : memref<1x6x8x128xf32, #tpu.memory_space<vmem>>, vector<1x1x8x128xf32>,
      %c0_57 = arith.constant 0 : index
      %c1_58 = arith.constant 1 : index
      %c0_59 = arith.constant 0 : index
      %c0_60 = arith.constant 0 : index
      %117 = vector.load %arg5[%c0_57, %c1_58, %c0_59, %c0_60] : memref<1x6x8x128xf32, #tpu.memory_space<vmem>>, vector<1x1x8x128xf32>
      %118 = vector.shape_cast %117 : vector<1x1x8x128xf32> to vector<8x128xf32>
      %119 = arith.addf %118, %102 : vector<8x128xf32>
      %c0_61 = arith.constant 0 : index
      %c1_62 = arith.constant 1 : index
      %c0_63 = arith.constant 0 : index
      %c0_64 = arith.constant 0 : index
      %120 = vector.load %arg5[%c0_61, %c1_62, %c0_63, %c0_64] : memref<1x6x8x128xf32, #tpu.memory_space<vmem>>, vector<1x1x8x128xf32>
      %121 = vector.shape_cast %120 : vector<1x1x8x128xf32> to vector<8x128xf32>
      %122 = vector.shape_cast %119 : vector<8x128xf32> to vector<1x1x8x128xf32>
      tpu.vector_store %arg5[%c0_61, %c1_62, %c0_63, %c0_64], %122 {strides = array<i32>} : memref<1x6x8x128xf32, #tpu.memory_space<vmem>>, vector<1x1x8x128xf32>,
      %c0_65 = arith.constant 0 : index
      %c2_66 = arith.constant 2 : index
      %c0_67 = arith.constant 0 : index
      %c0_68 = arith.constant 0 : index
      %123 = vector.load %arg5[%c0_65, %c2_66, %c0_67, %c0_68] : memref<1x6x8x128xf32, #tpu.memory_space<vmem>>, vector<1x1x8x128xf32>
      %124 = vector.shape_cast %123 : vector<1x1x8x128xf32> to vector<8x128xf32>
      %125 = arith.addf %124, %104 : vector<8x128xf32>
      %c0_69 = arith.constant 0 : index
      %c2_70 = arith.constant 2 : index
      %c0_71 = arith.constant 0 : index
      %c0_72 = arith.constant 0 : index
      %126 = vector.load %arg5[%c0_69, %c2_70, %c0_71, %c0_72] : memref<1x6x8x128xf32, #tpu.memory_space<vmem>>, vector<1x1x8x128xf32>
      %127 = vector.shape_cast %126 : vector<1x1x8x128xf32> to vector<8x128xf32>
      %128 = vector.shape_cast %125 : vector<8x128xf32> to vector<1x1x8x128xf32>
      tpu.vector_store %arg5[%c0_69, %c2_70, %c0_71, %c0_72], %128 {strides = array<i32>} : memref<1x6x8x128xf32, #tpu.memory_space<vmem>>, vector<1x1x8x128xf32>,
      %c0_73 = arith.constant 0 : index
      %c3 = arith.constant 3 : index
      %c0_74 = arith.constant 0 : index
      %c0_75 = arith.constant 0 : index
      %129 = vector.load %arg5[%c0_73, %c3, %c0_74, %c0_75] : memref<1x6x8x128xf32, #tpu.memory_space<vmem>>, vector<1x1x8x128xf32>
      %130 = vector.shape_cast %129 : vector<1x1x8x128xf32> to vector<8x128xf32>
      %131 = arith.addf %130, %106 : vector<8x128xf32>
      %c0_76 = arith.constant 0 : index
      %c3_77 = arith.constant 3 : index
      %c0_78 = arith.constant 0 : index
      %c0_79 = arith.constant 0 : index
      %132 = vector.load %arg5[%c0_76, %c3_77, %c0_78, %c0_79] : memref<1x6x8x128xf32, #tpu.memory_space<vmem>>, vector<1x1x8x128xf32>
      %133 = vector.shape_cast %132 : vector<1x1x8x128xf32> to vector<8x128xf32>
      %134 = vector.shape_cast %131 : vector<8x128xf32> to vector<1x1x8x128xf32>
      tpu.vector_store %arg5[%c0_76, %c3_77, %c0_78, %c0_79], %134 {strides = array<i32>} : memref<1x6x8x128xf32, #tpu.memory_space<vmem>>, vector<1x1x8x128xf32>,
      %c0_80 = arith.constant 0 : index
      %c4 = arith.constant 4 : index
      %c0_81 = arith.constant 0 : index
      %c0_82 = arith.constant 0 : index
      %135 = vector.load %arg5[%c0_80, %c4, %c0_81, %c0_82] : memref<1x6x8x128xf32, #tpu.memory_space<vmem>>, vector<1x1x8x128xf32>
      %136 = vector.shape_cast %135 : vector<1x1x8x128xf32> to vector<8x128xf32>
      %137 = arith.addf %136, %108 : vector<8x128xf32>
      %c0_83 = arith.constant 0 : index
      %c4_84 = arith.constant 4 : index
      %c0_85 = arith.constant 0 : index
      %c0_86 = arith.constant 0 : index
      %138 = vector.load %arg5[%c0_83, %c4_84, %c0_85, %c0_86] : memref<1x6x8x128xf32, #tpu.memory_space<vmem>>, vector<1x1x8x128xf32>
      %139 = vector.shape_cast %138 : vector<1x1x8x128xf32> to vector<8x128xf32>
      %140 = vector.shape_cast %137 : vector<8x128xf32> to vector<1x1x8x128xf32>
      tpu.vector_store %arg5[%c0_83, %c4_84, %c0_85, %c0_86], %140 {strides = array<i32>} : memref<1x6x8x128xf32, #tpu.memory_space<vmem>>, vector<1x1x8x128xf32>,
      %c0_87 = arith.constant 0 : index
      %c5 = arith.constant 5 : index
      %c0_88 = arith.constant 0 : index
      %c0_89 = arith.constant 0 : index
      %141 = vector.load %arg5[%c0_87, %c5, %c0_88, %c0_89] : memref<1x6x8x128xf32, #tpu.memory_space<vmem>>, vector<1x1x8x128xf32>
      %142 = vector.shape_cast %141 : vector<1x1x8x128xf32> to vector<8x128xf32>
      %143 = arith.addf %142, %110 : vector<8x128xf32>
      %c0_90 = arith.constant 0 : index
      %c5_91 = arith.constant 5 : index
      %c0_92 = arith.constant 0 : index
      %c0_93 = arith.constant 0 : index
      %144 = vector.load %arg5[%c0_90, %c5_91, %c0_92, %c0_93] : memref<1x6x8x128xf32, #tpu.memory_space<vmem>>, vector<1x1x8x128xf32>
      %145 = vector.shape_cast %144 : vector<1x1x8x128xf32> to vector<8x128xf32>
      %146 = vector.shape_cast %143 : vector<8x128xf32> to vector<1x1x8x128xf32>
      tpu.vector_store %arg5[%c0_90, %c5_91, %c0_92, %c0_93], %146 {strides = array<i32>} : memref<1x6x8x128xf32, #tpu.memory_space<vmem>>, vector<1x1x8x128xf32>,
    } else {
    }
    return
  }
  func.func @transform_0(%arg0: i32, %arg1: i32) -> (i32, i32, i32, i32) {
    %c0_i32 = arith.constant 0 : i32
    %0 = arith.subi %arg1, %c0_i32 : i32
    %c0_i32_0 = arith.constant 0 : i32
    %1 = arith.maxsi %0, %c0_i32_0 : i32
    %c0_i32_1 = arith.constant 0 : i32
    %2 = arith.minsi %1, %c0_i32_1 : i32
    %c0_i32_2 = arith.constant 0 : i32
    %c0_i32_3 = arith.constant 0 : i32
    %c0_i32_4 = arith.constant 0 : i32
    return %arg0, %c0_i32_2, %2, %c0_i32_3 : i32, i32, i32, i32
  }
  func.func @transform_1(%arg0: i32, %arg1: i32) -> (i32, i32, i32, i32) {
    %c1_i32 = arith.constant 1 : i32
    %0 = arith.subi %arg1, %c1_i32 : i32
    %c0_i32 = arith.constant 0 : i32
    %1 = arith.maxsi %0, %c0_i32 : i32
    %c0_i32_0 = arith.constant 0 : i32
    %2 = arith.minsi %1, %c0_i32_0 : i32
    %c0_i32_1 = arith.constant 0 : i32
    %c0_i32_2 = arith.constant 0 : i32
    %c0_i32_3 = arith.constant 0 : i32
    return %arg0, %c0_i32_1, %2, %c0_i32_2 : i32, i32, i32, i32
  }
  func.func @transform_2(%arg0: i32, %arg1: i32) -> (i32, i32, i32, i32) {
    %c0_i32 = arith.constant 0 : i32
    %c0_i32_0 = arith.constant 0 : i32
    %c0_i32_1 = arith.constant 0 : i32
    %c0_i32_2 = arith.constant 0 : i32
    return %arg0, %c0_i32, %c0_i32_0, %c0_i32_1 : i32, i32, i32, i32
  }
  func.func @transform_3(%arg0: i32, %arg1: i32) -> (i32, i32, i32, i32) {
    %c0_i32 = arith.constant 0 : i32
    %c0_i32_0 = arith.constant 0 : i32
    %c0_i32_1 = arith.constant 0 : i32
    %c0_i32_2 = arith.constant 0 : i32
    return %arg0, %c0_i32, %c0_i32_0, %c0_i32_1 : i32, i32, i32, i32
  }
}

</mosaic_0001>

<llo_original>
// kernel: tpu_custom_call.1
$region0: #{tpu_custom_call.1}
  #allocation0 [shape = 'u32[]', space=smem, size = 0x4, offset = 0x4, fixed_abs, tag = 'smem constant byte address 0x4 - core index']
  #allocation1 [shape = 'u32[144,128]{1,0:T(1,128)}', space=vmem, size = 0x12000, scoped, tag = 'internal scratch']
  %s0 = inlined_call_operand.hbm [shape: f32[2,3,8,128], index: 0, kind: input, shape index: {}]
  %s1 = inlined_call_operand.hbm [shape: f32[2,3,32,128], index: 1, kind: input, shape index: {}]
  %s2 = inlined_call_operand.hbm [shape: f32[2,6,8,128], index: 2, kind: output, shape index: {0}]
  %s3 = inlined_call_operand.hbm [shape: f32[2,6,8,128], index: 3, kind: output, shape index: {1}]
  %4 = xla_tuple %s2, %s3
  %s5 = sld [smem:[#allocation0]]
  $region69: #{tpu_custom_call.1} parent=0
    _
  %s7 = ssub.s32 1, %s5
  %s8 = scalar_select 0, %s7, %s5
  $region1: #{tpu_custom_call.1} parent=0
    #allocation2 [shape = 'u8[24576]{0}', space=vmem, size = 0x6000, scoped, tag = 'input window, operand 0']
    #allocation3 [shape = 's32[2]{0}', space=sflag, size = 0x8, scoped, tag = 'scoped memory for tpu_custom_call.1']
    #allocation4 [shape = 's32[2]{0}', space=sflag, size = 0x8, scoped, tag = 'scoped memory for tpu_custom_call.1']
    #allocation5 [shape = 'u8[98304]{0}', space=vmem, size = 0x18000, scoped, tag = 'input window, operand 1']
    #allocation6 [shape = 's32[2]{0}', space=sflag, size = 0x8, scoped, tag = 'scoped memory for tpu_custom_call.1']
    #allocation7 [shape = 'u8[49152]{0}', space=vmem, size = 0xc000, scoped, tag = 'output window, operand 0']
    #allocation8 [shape = 'u8[49152]{0}', space=vmem, size = 0xc000, scoped, tag = 'output window, operand 1']
    #allocation9 [shape = 's32[2]{0}', space=sflag, size = 0x8, scoped, tag = 'scoped memory for tpu_custom_call.1']
    %9 = vsyncpa [#allocation3], 0
    %s10 = scalar_lea.sflag [#allocation3], 1
    %11 = vsyncpa %s10, 0
    %12 = vsyncpa [#allocation6], 0
    %s13 = scalar_lea.sflag [#allocation6], 1
    %14 = vsyncpa %s13, 0
    %15 = vsyncpa [#allocation4], 0
    %s16 = scalar_lea.sflag [#allocation4], 1
    %17 = vsyncpa %s16, 0
    %18 = vsyncpa [#allocation9], 0
    %s19 = scalar_lea.sflag [#allocation9], 1
    %20 = vsyncpa %s19, 0
    loop: start=0, step=1, limit=6
    $region2: #{tpu_custom_call.1} parent=1 // loop_pre_header
      _
    $region3: #{tpu_custom_call.1} parent=1 // loop_header
      %s22 = sphi 0, %s26
      %p23 = scmp.ge.s32.totalorder %s22, 6
      %s29 = sphi 0, %s41
      %s30 = sphi 0, %s37
      %s31 = sphi 0, %s29
      %s32 = sphi 0, %s30
      %s33 = sphi 0, %s31
      %s34 = sphi 0, %s32
      %s54 = sphi 0, %s56
      %s57 = sphi 0, %s54
      %s58 = sphi 0, %s57
      %s74 = sphi 0, %s58
      %s92 = sphi 0, %s94
      %s95 = sphi 0, %s92
      %s96 = sphi 0, %s95
      %s112 = sphi 0, %s96
      %s118 = sphi 0, %s120
      %s121 = sphi 0, %s118
      %s122 = sphi 0, %s121
      %s138 = sphi 0, %s122
      %s144 = sphi 0, %s146
      %s147 = sphi 0, %s144
      %s148 = sphi 0, %s147
      %s164 = sphi 0, %s148
    $region4: #{tpu_custom_call.1} parent=1 // loop_header_branch
      %25 = sbr.rel (%p23) target = $region8
    $region5: #{tpu_custom_call.1} parent=1 // loop_body
      %s27 = ssub.s32 %s22, 1
      %s28 = ssub.s32 %s22, 2
      %s35 = sadd.s32 1, %s30
      %p36 = scmp.ge.s32.totalorder %s35, 2
      %s37 = scalar_select %p36, 0, %s35
      %s38 = sadd.s32 1, %s29
      %s39 = scalar_select %p36, %s38, %s29
      %p40 = scmp.ge.s32.totalorder %s39, 2
      %s41 = scalar_select %p40, 0, %s39
      %p42 = scmp.gt.s32.totalorder %s30, 0
      %s43 = scalar_select %p42, %s30, 0
      %p44 = scmp.lt.s32.totalorder %s43, 0
      %s45 = scalar_select %p44, %s43, 0
      %p46 = scmp.gt.s32.totalorder %s37, 0
      %s47 = scalar_select %p46, %s37, 0
      %p48 = scmp.lt.s32.totalorder %s47, 0
      %s49 = scalar_select %p48, %s47, 0
      %s50 = ssub.s32 %s29, %s41
      %s51 = ssub.s32 %s45, %s49
      %s52 = sor.u32 %s50, %s51
      %p53 = scmp.eq.s32.totalorder %s52, 0
      %s55 = sadd.s32 %s54, 1
      %s56 = scalar_select %p53, %s54, %s55
      %p59 = pneg %p53
      %p60 = scmp.eq.s32.totalorder %s22, 3
      %p61 = por %p59, %p60
      %p62 = scmp.ne.s32.totalorder %s54, %s57
      %p63 = scmp.eq.s32.totalorder %s22, 0
      %p64 = por %p62, %p63
      %p65 = scmp.ne.s32.totalorder %s54, %s57
      %p66 = scmp.eq.s32.totalorder %s27, 3
      %p67 = por %p65, %p66
      %p68 = scmp.ne.s32.totalorder %s57, %s58
      %p69 = scmp.eq.s32.totalorder %s27, 0
      %p70 = por %p68, %p69
      %p71 = scmp.ne.s32.totalorder %s57, %s58
      %p72 = scmp.eq.s32.totalorder %s28, 3
      %p73 = por %p71, %p72
      %p75 = scmp.ne.s32.totalorder %s58, %s74
      %p76 = scmp.eq.s32.totalorder %s28, 0
      %p77 = por %p75, %p76
      %s78 = ssub.s32 %s30, 1
      %p79 = scmp.gt.s32.totalorder %s78, 0
      %s80 = scalar_select %p79, %s78, 0
      %p81 = scmp.lt.s32.totalorder %s80, 0
      %s82 = scalar_select %p81, %s80, 0
      %s83 = ssub.s32 %s37, 1
      %p84 = scmp.gt.s32.totalorder %s83, 0
      %s85 = scalar_select %p84, %s83, 0
      %p86 = scmp.lt.s32.totalorder %s85, 0
      %s87 = scalar_select %p86, %s85, 0
      %s88 = ssub.s32 %s29, %s41
      %s89 = ssub.s32 %s82, %s87
      %s90 = sor.u32 %s88, %s89
      %p91 = scmp.eq.s32.totalorder %s90, 0
      %s93 = sadd.s32 %s92, 1
      %s94 = scalar_select %p91, %s92, %s93
      %p97 = pneg %p91
      %p98 = scmp.eq.s32.totalorder %s22, 3
      %p99 = por %p97, %p98
      %p100 = scmp.ne.s32.totalorder %s92, %s95
      %p101 = scmp.eq.s32.totalorder %s22, 0
      %p102 = por %p100, %p101
      %p103 = scmp.ne.s32.totalorder %s92, %s95
      %p104 = scmp.eq.s32.totalorder %s27, 3
      %p105 = por %p103, %p104
      %p106 = scmp.ne.s32.totalorder %s95, %s96
      %p107 = scmp.eq.s32.totalorder %s27, 0
      %p108 = por %p106, %p107
      %p109 = scmp.ne.s32.totalorder %s95, %s96
      %p110 = scmp.eq.s32.totalorder %s28, 3
      %p111 = por %p109, %p110
      %p113 = scmp.ne.s32.totalorder %s96, %s112
      %p114 = scmp.eq.s32.totalorder %s28, 0
      %p115 = por %p113, %p114
      %s116 = ssub.s32 %s29, %s41
      %p117 = scmp.eq.s32.totalorder %s116, 0
      %s119 = sadd.s32 %s118, 1
      %s120 = scalar_select %p117, %s118, %s119
      %p123 = pneg %p117
      %p124 = scmp.eq.s32.totalorder %s22, 3
      %p125 = por %p123, %p124
      %p126 = scmp.ne.s32.totalorder %s118, %s121
      %p127 = scmp.eq.s32.totalorder %s22, 0
      %p128 = por %p126, %p127
      %p129 = scmp.ne.s32.totalorder %s118, %s121
      %p130 = scmp.eq.s32.totalorder %s27, 3
      %p131 = por %p129, %p130
      %p132 = scmp.ne.s32.totalorder %s121, %s122
      %p133 = scmp.eq.s32.totalorder %s27, 0
      %p134 = por %p132, %p133
      %p135 = scmp.ne.s32.totalorder %s121, %s122
      %p136 = scmp.eq.s32.totalorder %s28, 3
      %p137 = por %p135, %p136
      %p139 = scmp.ne.s32.totalorder %s122, %s138
      %p140 = scmp.eq.s32.totalorder %s28, 0
      %p141 = por %p139, %p140
      %s142 = ssub.s32 %s29, %s41
      %p143 = scmp.eq.s32.totalorder %s142, 0
      %s145 = sadd.s32 %s144, 1
      %s146 = scalar_select %p143, %s144, %s145
      %p149 = pneg %p143
      %p150 = scmp.eq.s32.totalorder %s22, 3
      %p151 = por %p149, %p150
      %p152 = scmp.ne.s32.totalorder %s144, %s147
      %p153 = scmp.eq.s32.totalorder %s22, 0
      %p154 = por %p152, %p153
      %p155 = scmp.ne.s32.totalorder %s144, %s147
      %p156 = scmp.eq.s32.totalorder %s27, 3
      %p157 = por %p155, %p156
      %p158 = scmp.ne.s32.totalorder %s147, %s148
      %p159 = scmp.eq.s32.totalorder %s27, 0
      %p160 = por %p158, %p159
      %p161 = scmp.ne.s32.totalorder %s147, %s148
      %p162 = scmp.eq.s32.totalorder %s28, 3
      %p163 = por %p161, %p162
      %p165 = scmp.ne.s32.totalorder %s148, %s164
      %p166 = scmp.eq.s32.totalorder %s28, 0
      %p167 = por %p165, %p166
      %p168 = scmp.le.s32.totalorder 1, %s22
      %p169 = scmp.lt.s32.totalorder %s22, 5
      %p170 = pnand %p168, %p169
      %p171 = pneg %p170
      // Predicated region
      $region9: #{tpu_custom_call.1} parent=5 // pred_check
        _
      $region10: #{tpu_custom_call.1} parent=5 // pred_check_branch
        %173 = sbr.rel (%p170) target = $region12
      $region11: #{tpu_custom_call.1} parent=5 // pred_region
        %s174 = ssub.s32 %s22, 1
      $region12: #{tpu_custom_call.1} parent=5 // pred_fallthru
        _
      %p175 = scmp.lt.s32.totalorder %s22, 4
      // Predicated region
      $region13: #{tpu_custom_call.1} parent=5 // pred_check
        %p176 = pneg %p175
      $region14: #{tpu_custom_call.1} parent=5 // pred_check_branch
        %178 = sbr.rel (%p176) target = $region16
      $region15: #{tpu_custom_call.1} parent=5 // pred_region
        // Predicated region
        $region17: #{tpu_custom_call.1} parent=15 // pred_check
          %p179 = pneg %p64
        $region18: #{tpu_custom_call.1} parent=15 // pred_check_branch
          %181 = sbr.rel (%p179) target = $region20
        $region19: #{tpu_custom_call.1} parent=15 // pred_region
          %s182 = sand.u32 %s54, 1
          %s183 = scalar_lea.sflag [#allocation3], %s182
          %s184 = sand.u32 %s54, 1
          %s185 = smul.addr %s184, 24
          %s186 = scalar_lea.vmem [#allocation2], %s185
          %p187 = scmp.gt.s32.totalorder %s30, 0
          %s188 = scalar_select %p187, %s30, 0
          %p189 = scmp.lt.s32.totalorder %s188, 0
          %s190 = scalar_select %p189, %s188, 0
          %s192 = ssub.s32 384, 384
          %193 = vsyncadd %s183, %s192
          %s194 = smul.addr %s29, 3
          %s195 = sadd.s32 %s190, %s194
          %s196 = smul.addr %s195, 128
          %s197 = scalar_lea.hbm %s0, %s196
          %s198 = sshll.u32 %s186, 4
          %s199 = int_to_ptr.vmem [resolvable:$true] %s198
          %204 = dma.hbm_to_vmem [thread:$0]  %s197, 384, %s199, %s183, 128, 128, 8
        $region20: #{tpu_custom_call.1} parent=15 // pred_fallthru
          _
        // Predicated region
        $region21: #{tpu_custom_call.1} parent=15 // pred_check
          %p205 = pneg %p102
        $region22: #{tpu_custom_call.1} parent=15 // pred_check_branch
          %207 = sbr.rel (%p205) target = $region24
        $region23: #{tpu_custom_call.1} parent=15 // pred_region
          %s208 = sand.u32 %s92, 1
          %s209 = scalar_lea.sflag [#allocation6], %s208
          %s210 = sand.u32 %s92, 1
          %s211 = smul.addr %s210, 96
          %s212 = scalar_lea.vmem [#allocation5], %s211
          %s213 = ssub.s32 %s30, 1
          %p214 = scmp.gt.s32.totalorder %s213, 0
          %s215 = scalar_select %p214, %s213, 0
          %p216 = scmp.lt.s32.totalorder %s215, 0
          %s217 = scalar_select %p216, %s215, 0
          %s218 = smul.u32 4, %s217
          %s220 = ssub.s32 1536, 1536
          %221 = vsyncadd %s209, %s220
          %s222 = smul.addr %s29, 12
          %s223 = sadd.s32 %s218, %s222
          %s224 = smul.addr %s223, 128
          %s225 = scalar_lea.hbm %s1, %s224
          %s226 = sshll.u32 %s212, 4
          %s227 = int_to_ptr.vmem [resolvable:$true] %s226
          %232 = dma.hbm_to_vmem [thread:$0]  %s225, 1536, %s227, %s209, 128, 128, 8
        $region24: #{tpu_custom_call.1} parent=15 // pred_fallthru
          _
      $region16: #{tpu_custom_call.1} parent=5 // pred_fallthru
        _
      %p233 = scmp.le.s32.totalorder 1, %s22
      %p234 = scmp.lt.s32.totalorder %s22, 5
      %p235 = pnand %p233, %p234
      %p236 = pneg %p235
      // Predicated region
      $region25: #{tpu_custom_call.1} parent=5 // pred_check
        _
      $region26: #{tpu_custom_call.1} parent=5 // pred_check_branch
        %238 = sbr.rel (%p235) target = $region28
      $region27: #{tpu_custom_call.1} parent=5 // pred_region
        %s239 = ssub.s32 %s22, 1
        %s240 = sand.u32 %s57, 1
        %s241 = scalar_lea.sflag [#allocation3], %s240
        %s242 = sand.u32 %s57, 1
        %s243 = smul.addr %s242, 24
        %s244 = scalar_lea.vmem [#allocation2], %s243
        // Predicated region
        $region29: #{tpu_custom_call.1} parent=27 // pred_check
          %p245 = pneg %p70
        $region30: #{tpu_custom_call.1} parent=27 // pred_check_branch
          %247 = sbr.rel (%p245) target = $region32
        $region31: #{tpu_custom_call.1} parent=27 // pred_region
          %248 = dma.done %s241, 384
        $region32: #{tpu_custom_call.1} parent=27 // pred_fallthru
          _
        %s249 = sand.u32 %s95, 1
        %s250 = scalar_lea.sflag [#allocation6], %s249
        %s251 = sand.u32 %s95, 1
        %s252 = smul.addr %s251, 96
        %s253 = scalar_lea.vmem [#allocation5], %s252
        // Predicated region
        $region33: #{tpu_custom_call.1} parent=27 // pred_check
          %p254 = pneg %p108
        $region34: #{tpu_custom_call.1} parent=27 // pred_check_branch
          %256 = sbr.rel (%p254) target = $region36
        $region35: #{tpu_custom_call.1} parent=27 // pred_region
          %257 = dma.done %s250, 1536
        $region36: #{tpu_custom_call.1} parent=27 // pred_fallthru
          _
        %s258 = sand.u32 %s57, 1
        %s259 = scalar_lea.sflag [#allocation3], %s258
        %s260 = sand.u32 %s57, 1
        %s261 = smul.addr %s260, 24
        %s262 = scalar_lea.vmem [#allocation2], %s261
        %p263 = pneg %p70
        %p264 = pneg %p67
        %s265 = sand.u32 %s95, 1
        %s266 = scalar_lea.sflag [#allocation6], %s265
        %s267 = sand.u32 %s95, 1
        %s268 = smul.addr %s267, 96
        %s269 = scalar_lea.vmem [#allocation5], %s268
        %p270 = pneg %p108
        %p271 = pneg %p105
        %p272 = pneg %p134
        %p273 = pneg %p131
        %s274 = sand.u32 %s121, 1
        %s275 = scalar_lea.sflag [#allocation4], %s274
        %s276 = sand.u32 %s121, 1
        %s277 = smul.addr %s276, 48
        %s278 = scalar_lea.vmem [#allocation7], %s277
        %p279 = pneg %p160
        %p280 = pneg %p157
        %s281 = sand.u32 %s147, 1
        %s282 = scalar_lea.sflag [#allocation9], %s281
        %s283 = sand.u32 %s147, 1
        %s284 = smul.addr %s283, 48
        %s285 = scalar_lea.vmem [#allocation8], %s284
        %p286 = scmp.gt.s32.totalorder %s32, 0
        %s287 = scalar_select %p286, %s32, 0
        %p288 = scmp.lt.s32.totalorder %s287, 0
        %s289 = scalar_select %p288, %s287, 0
        %s290 = ssub.s32 %s32, 1
        %p291 = scmp.gt.s32.totalorder %s290, 0
        %s292 = scalar_select %p291, %s290, 0
        %p293 = scmp.lt.s32.totalorder %s292, 0
        %s294 = scalar_select %p293, %s292, 0
        %s295 = smul.u32 4, %s294
        %p296 = scmp.eq.s32.totalorder %s32, 0
        // Predicated region
        $region37: #{tpu_custom_call.1} parent=27 // pred_check
          %p297 = pneg %p296
        $region38: #{tpu_custom_call.1} parent=27 // pred_check_branch
          %299 = sbr.rel (%p297) target = $region40
        $region39: #{tpu_custom_call.1} parent=27 // pred_region
          %300 = vst [vmem:[%s278] sm:$0xff] 0.0
          %301 = vst [vmem:[%s278 + $0x8] sm:$0xff] 0.0
          %302 = vst [vmem:[%s278 + $0x10] sm:$0xff] 0.0
          %303 = vst [vmem:[%s278 + $0x18] sm:$0xff] 0.0
          %304 = vst [vmem:[%s278 + $0x20] sm:$0xff] 0.0
          %305 = vst [vmem:[%s278 + $0x28] sm:$0xff] 0.0
          %306 = vst [vmem:[%s285] sm:$0xff] 0.0
          %307 = vst [vmem:[%s285 + $0x8] sm:$0xff] 0.0
          %308 = vst [vmem:[%s285 + $0x10] sm:$0xff] 0.0
          %309 = vst [vmem:[%s285 + $0x18] sm:$0xff] 0.0
          %310 = vst [vmem:[%s285 + $0x20] sm:$0xff] 0.0
          %311 = vst [vmem:[%s285 + $0x28] sm:$0xff] 0.0
        $region40: #{tpu_custom_call.1} parent=27 // pred_fallthru
          _
        %p312 = scmp.ge.s32.totalorder %s32, 0
        %p313 = scmp.lt.s32.totalorder %s32, 1
        %p314 = pnand %p312, %p313
        %p315 = pneg %p314
        // Predicated region
        $region41: #{tpu_custom_call.1} parent=27 // pred_check
          _
        $region42: #{tpu_custom_call.1} parent=27 // pred_check_branch
          %317 = sbr.rel (%p314) target = $region44
        $region43: #{tpu_custom_call.1} parent=27 // pred_region
          %v318 = vld [vmem:[%s244] sm:$0xff]
          %s319 = sadd.s32 0, 8
          %s320 = scalar_lea.vmem %s244, %s319 [#allocation2]
          %v321 = vld [vmem:[%s320] sm:$0xff]
          %s322 = sadd.s32 0, 16
          %s323 = scalar_lea.vmem %s244, %s322 [#allocation2]
          %v324 = vld [vmem:[%s323] sm:$0xff]
          %v325 = vmul.f32 %v318, %v318
          %v326 = vadd.f32 %v325, 0.0
          %v327 = vmul.f32 %v318, %v321
          %v328 = vadd.f32 %v327, 0.0
          %v329 = vmul.f32 %v318, %v324
          %v330 = vadd.f32 %v329, 0.0
          %v331 = vmul.f32 %v321, %v321
          %v332 = vadd.f32 %v331, 0.0
          %v333 = vmul.f32 %v321, %v324
          %v334 = vadd.f32 %v333, 0.0
          %v335 = vmul.f32 %v324, %v324
          %v336 = vadd.f32 %v335, 0.0
          %v337 = vld [vmem:[%s278] sm:$0xff]
          %v338 = vadd.f32 %v337, %v326
          %339 = vst [vmem:[%s278] sm:$0xff] %v338
          %s340 = scalar_lea.vmem %s278, 8 [#allocation7]
          %v341 = vld [vmem:[%s340] sm:$0xff]
          %v342 = vadd.f32 %v341, %v328
          %343 = vst [vmem:[%s340] sm:$0xff] %v342
          %s344 = scalar_lea.vmem %s278, 16 [#allocation7]
          %v345 = vld [vmem:[%s344] sm:$0xff]
          %v346 = vadd.f32 %v345, %v330
          %347 = vst [vmem:[%s344] sm:$0xff] %v346
          %s348 = scalar_lea.vmem %s278, 24 [#allocation7]
          %v349 = vld [vmem:[%s348] sm:$0xff]
          %v350 = vadd.f32 %v349, %v332
          %351 = vst [vmem:[%s348] sm:$0xff] %v350
          %s352 = scalar_lea.vmem %s278, 32 [#allocation7]
          %v353 = vld [vmem:[%s352] sm:$0xff]
          %v354 = vadd.f32 %v353, %v334
          %355 = vst [vmem:[%s352] sm:$0xff] %v354
          %s356 = scalar_lea.vmem %s278, 40 [#allocation7]
          %v357 = vld [vmem:[%s356] sm:$0xff]
          %v358 = vadd.f32 %v357, %v336
          %359 = vst [vmem:[%s356] sm:$0xff] %v358
        $region44: #{tpu_custom_call.1} parent=27 // pred_fallthru
          _
        %p360 = scmp.ge.s32.totalorder %s32, 1
        %p361 = scmp.lt.s32.totalorder %s32, 2
        %p362 = pnand %p360, %p361
        %p363 = pneg %p362
        // Predicated region
        $region45: #{tpu_custom_call.1} parent=27 // pred_check
          _
        $region46: #{tpu_custom_call.1} parent=27 // pred_check_branch
          %365 = sbr.rel (%p362) target = $region48
        $region47: #{tpu_custom_call.1} parent=27 // pred_region
          %v366 = vld [vmem:[%s253] sm:$0xff]
          %s367 = sadd.s32 0, 32
          %s368 = scalar_lea.vmem %s253, %s367 [#allocation5]
          %v369 = vld [vmem:[%s368] sm:$0xff]
          %s370 = sadd.s32 0, 64
          %s371 = scalar_lea.vmem %s253, %s370 [#allocation5]
          %v372 = vld [vmem:[%s371] sm:$0xff]
          %v373 = vmul.f32 %v366, %v366
          %v374 = vadd.f32 %v373, 0.0
          %v375 = vmul.f32 %v366, %v369
          %v376 = vadd.f32 %v375, 0.0
          %v377 = vmul.f32 %v366, %v372
          %v378 = vadd.f32 %v377, 0.0
          %v379 = vmul.f32 %v369, %v369
          %v380 = vadd.f32 %v379, 0.0
          %v381 = vmul.f32 %v369, %v372
          %v382 = vadd.f32 %v381, 0.0
          %v383 = vmul.f32 %v372, %v372
          %v384 = vadd.f32 %v383, 0.0
          %s385 = scalar_lea.vmem %s253, 8 [#allocation5]
          %v386 = vld [vmem:[%s385] sm:$0xff]
          %s387 = sadd.s32 8, 32
          %s388 = scalar_lea.vmem %s253, %s387 [#allocation5]
          %v389 = vld [vmem:[%s388] sm:$0xff]
          %s390 = sadd.s32 8, 64
          %s391 = scalar_lea.vmem %s253, %s390 [#allocation5]
          %v392 = vld [vmem:[%s391] sm:$0xff]
          %v393 = vmul.f32 %v386, %v386
          %v394 = vadd.f32 %v374, %v393
          %v395 = vmul.f32 %v386, %v389
          %v396 = vadd.f32 %v376, %v395
          %v397 = vmul.f32 %v386, %v392
          %v398 = vadd.f32 %v378, %v397
          %v399 = vmul.f32 %v389, %v389
          %v400 = vadd.f32 %v380, %v399
          %v401 = vmul.f32 %v389, %v392
          %v402 = vadd.f32 %v382, %v401
          %v403 = vmul.f32 %v392, %v392
          %v404 = vadd.f32 %v384, %v403
          %s405 = scalar_lea.vmem %s253, 16 [#allocation5]
          %v406 = vld [vmem:[%s405] sm:$0xff]
          %s407 = sadd.s32 16, 32
          %s408 = scalar_lea.vmem %s253, %s407 [#allocation5]
          %v409 = vld [vmem:[%s408] sm:$0xff]
          %s410 = sadd.s32 16, 64
          %s411 = scalar_lea.vmem %s253, %s410 [#allocation5]
          %v412 = vld [vmem:[%s411] sm:$0xff]
          %v413 = vmul.f32 %v406, %v406
          %v414 = vadd.f32 %v394, %v413
          %v415 = vmul.f32 %v406, %v409
          %v416 = vadd.f32 %v396, %v415
          %v417 = vmul.f32 %v406, %v412
          %v418 = vadd.f32 %v398, %v417
          %v419 = vmul.f32 %v409, %v409
          %v420 = vadd.f32 %v400, %v419
          %v421 = vmul.f32 %v409, %v412
          %v422 = vadd.f32 %v402, %v421
          %v423 = vmul.f32 %v412, %v412
          %v424 = vadd.f32 %v404, %v423
          %s425 = scalar_lea.vmem %s253, 24 [#allocation5]
          %v426 = vld [vmem:[%s425] sm:$0xff]
          %s427 = sadd.s32 24, 32
          %s428 = scalar_lea.vmem %s253, %s427 [#allocation5]
          %v429 = vld [vmem:[%s428] sm:$0xff]
          %s430 = sadd.s32 24, 64
          %s431 = scalar_lea.vmem %s253, %s430 [#allocation5]
          %v432 = vld [vmem:[%s431] sm:$0xff]
          %v433 = vmul.f32 %v426, %v426
          %v434 = vadd.f32 %v414, %v433
          %v435 = vmul.f32 %v426, %v429
          %v436 = vadd.f32 %v416, %v435
          %v437 = vmul.f32 %v426, %v432
          %v438 = vadd.f32 %v418, %v437
          %v439 = vmul.f32 %v429, %v429
          %v440 = vadd.f32 %v420, %v439
          %v441 = vmul.f32 %v429, %v432
          %v442 = vadd.f32 %v422, %v441
          %v443 = vmul.f32 %v432, %v432
          %v444 = vadd.f32 %v424, %v443
          %v445 = vld [vmem:[%s285] sm:$0xff]
          %v446 = vadd.f32 %v445, %v434
          %447 = vst [vmem:[%s285] sm:$0xff] %v446
          %s448 = scalar_lea.vmem %s285, 8 [#allocation8]
          %v449 = vld [vmem:[%s448] sm:$0xff]
          %v450 = vadd.f32 %v449, %v436
          %451 = vst [vmem:[%s448] sm:$0xff] %v450
          %s452 = scalar_lea.vmem %s285, 16 [#allocation8]
          %v453 = vld [vmem:[%s452] sm:$0xff]
          %v454 = vadd.f32 %v453, %v438
          %455 = vst [vmem:[%s452] sm:$0xff] %v454
          %s456 = scalar_lea.vmem %s285, 24 [#allocation8]
          %v457 = vld [vmem:[%s456] sm:$0xff]
          %v458 = vadd.f32 %v457, %v440
          %459 = vst [vmem:[%s456] sm:$0xff] %v458
          %s460 = scalar_lea.vmem %s285, 32 [#allocation8]
          %v461 = vld [vmem:[%s460] sm:$0xff]
          %v462 = vadd.f32 %v461, %v442
          %463 = vst [vmem:[%s460] sm:$0xff] %v462
          %s464 = scalar_lea.vmem %s285, 40 [#allocation8]
          %v465 = vld [vmem:[%s464] sm:$0xff]
          %v466 = vadd.f32 %v465, %v444
          %467 = vst [vmem:[%s464] sm:$0xff] %v466
        $region48: #{tpu_custom_call.1} parent=27 // pred_fallthru
          _
        %s468 = sand.u32 %s121, 1
        %s469 = scalar_lea.sflag [#allocation4], %s468
        %s470 = sand.u32 %s121, 1
        %s471 = smul.addr %s470, 48
        %s472 = scalar_lea.vmem [#allocation7], %s471
        %s473 = sand.u32 %s147, 1
        %s474 = scalar_lea.sflag [#allocation9], %s473
        %s475 = sand.u32 %s147, 1
        %s476 = smul.addr %s475, 48
        %s477 = scalar_lea.vmem [#allocation8], %s476
        // Predicated region
        $region49: #{tpu_custom_call.1} parent=27 // pred_check
          %p478 = pneg %p131
        $region50: #{tpu_custom_call.1} parent=27 // pred_check_branch
          %480 = sbr.rel (%p478) target = $region52
        $region51: #{tpu_custom_call.1} parent=27 // pred_region
          %s482 = ssub.s32 768, 768
          %483 = vsyncadd %s469, %s482
          %s484 = smul.addr %s31, 6
          %s485 = smul.addr %s484, 128
          %s486 = scalar_lea.hbm %s2, %s485
          %s487 = sshll.u32 %s472, 4
          %s488 = int_to_ptr.vmem [resolvable:$true] %s487
          %493 = dma.vmem_to_hbm [thread:$0]  %s488, 768, %s486, %s469, 128, 128, 8
        $region52: #{tpu_custom_call.1} parent=27 // pred_fallthru
          _
        // Predicated region
        $region53: #{tpu_custom_call.1} parent=27 // pred_check
          %p494 = pneg %p157
        $region54: #{tpu_custom_call.1} parent=27 // pred_check_branch
          %496 = sbr.rel (%p494) target = $region56
        $region55: #{tpu_custom_call.1} parent=27 // pred_region
          %s498 = ssub.s32 768, 768
          %499 = vsyncadd %s474, %s498
          %s500 = smul.addr %s31, 6
          %s501 = smul.addr %s500, 128
          %s502 = scalar_lea.hbm %s3, %s501
          %s503 = sshll.u32 %s477, 4
          %s504 = int_to_ptr.vmem [resolvable:$true] %s503
          %509 = dma.vmem_to_hbm [thread:$0]  %s504, 768, %s502, %s474, 128, 128, 8
        $region56: #{tpu_custom_call.1} parent=27 // pred_fallthru
          _
      $region28: #{tpu_custom_call.1} parent=5 // pred_fallthru
        _
      %p510 = scmp.le.s32.totalorder 2, %s22
      // Predicated region
      $region57: #{tpu_custom_call.1} parent=5 // pred_check
        %p511 = pneg %p510
      $region58: #{tpu_custom_call.1} parent=5 // pred_check_branch
        %513 = sbr.rel (%p511) target = $region60
      $region59: #{tpu_custom_call.1} parent=5 // pred_region
        %s514 = ssub.s32 %s22, 2
        // Predicated region
        $region61: #{tpu_custom_call.1} parent=59 // pred_check
          %p515 = pneg %p137
        $region62: #{tpu_custom_call.1} parent=59 // pred_check_branch
          %517 = sbr.rel (%p515) target = $region64
        $region63: #{tpu_custom_call.1} parent=59 // pred_region
          %s518 = sand.u32 %s122, 1
          %s519 = scalar_lea.sflag [#allocation4], %s518
          %s520 = sand.u32 %s122, 1
          %s521 = smul.addr %s520, 48
          %s522 = scalar_lea.vmem [#allocation7], %s521
          %523 = dma.done %s519, 768
        $region64: #{tpu_custom_call.1} parent=59 // pred_fallthru
          _
        // Predicated region
        $region65: #{tpu_custom_call.1} parent=59 // pred_check
          %p524 = pneg %p163
        $region66: #{tpu_custom_call.1} parent=59 // pred_check_branch
          %526 = sbr.rel (%p524) target = $region68
        $region67: #{tpu_custom_call.1} parent=59 // pred_region
          %s527 = sand.u32 %s148, 1
          %s528 = scalar_lea.sflag [#allocation9], %s527
          %s529 = sand.u32 %s148, 1
          %s530 = smul.addr %s529, 48
          %s531 = scalar_lea.vmem [#allocation8], %s530
          %532 = dma.done %s528, 768
        $region68: #{tpu_custom_call.1} parent=59 // pred_fallthru
          _
      $region60: #{tpu_custom_call.1} parent=5 // pred_fallthru
        _
    $region6: #{tpu_custom_call.1} parent=1 // loop_footer
      %s26 = sadd.s32 1, %s22
    $region7: #{tpu_custom_call.1} parent=1 // loop_footer_branch
      %21 = sbr.rel target = $region3
    $region8: #{tpu_custom_call.1} parent=1 // loop_exit
      _
    %533 = vsyncpa [#allocation3], 1
    %s534 = scalar_lea.sflag [#allocation3], 1
    %535 = vsyncpa %s534, 1
    %536 = vsyncpa [#allocation6], 1
    %s537 = scalar_lea.sflag [#allocation6], 1
    %538 = vsyncpa %s537, 1
    %539 = vsyncpa [#allocation4], 1
    %s540 = scalar_lea.sflag [#allocation4], 1
    %541 = vsyncpa %s540, 1
    %542 = vsyncpa [#allocation9], 1
    %s543 = scalar_lea.sflag [#allocation9], 1
    %544 = vsyncpa %s543, 1

</llo_original>
